<compile_context>
chip_gen: v6e
topology: v6e:2x2x1
jax: 0.10.0
libtpu: 0.0.40
codegen_flags: <defaults>
</compile_context>

<pallas_src>
import functools

import jax
import jax.numpy as jnp
from jax.experimental import pallas as pl
from jax.experimental.pallas import tpu as pltpu

_MIN_GRID_STEPS = 4  # keep >= this many grid steps so v7x's 2 TCs both work


def _round_up(x, m):
    return ((x + m - 1) // m) * m


def _default_fold():
    """FOLD=8 (256-wide packing) on 256x256-MXU chips (v6e/v7x); FOLD=4
    (128-wide) on v5e and older (128x128 MXU, single vector-store slot)."""
    try:
        kind = jax.devices()[0].device_kind.lower()
    except Exception:
        return 4
    if "v6" in kind or "v7" in kind or "7x" in kind:
        return 8
    return 4


def _linear_kernel(x_ref, w_ref, b_ref, o_ref):
    # x_ref: (TM, Kp)  w_ref: (Kp, Np)  b_ref: (1, Np)  o_ref: (TM, Np)
    acc = jnp.dot(
        x_ref[...],
        w_ref[...],
        preferred_element_type=jnp.float32,
        precision=jax.lax.Precision.HIGHEST,
    )
    o_ref[...] = (acc + b_ref[...]).astype(o_ref.dtype)


def pack_linear_params(weight, bias, fold=None):
    """Pre-pack PyTorch-layout Linear params for the lane-dense folded kernel.

    weight: (N, K), bias: (N,) -> w_packed: (fold*K, fold*N) = kron(I, W.T),
    b_packed: (1, fold*N).  Done once, outside the forward path.
    """
    if fold is None:
        fold = _default_fold()
    wt = weight.T  # (K, N): y = x @ W.T
    eye = jnp.eye(fold, dtype=wt.dtype)
    w_packed = jnp.kron(eye, wt)                               # (fold*K, fold*N)
    b_packed = jnp.tile(bias, (fold,)).reshape(1, fold * bias.shape[0])
    return w_packed, b_packed


@functools.partial(
    jax.jit, static_argnames=("tm", "min_pallas_rows", "force_pallas")
)
def prot_final_v3_forward(h, w_packed, b_packed, *, tm=4096,
                          min_pallas_rows=4096, force_pallas=False):
    """h: (..., K) float32; w_packed/b_packed from pack_linear_params."""
    *lead, K = h.shape
    Kp, Np = w_packed.shape
    fold = Kp // K
    assert Kp == fold * K
    N = Np // fold

    M = 1
    for d in lead:
        M *= d

    # Small-M fast path: a standalone pallas_call is pure launch overhead here;
    # the top-left (K, N) block of kron(I, W.T) is exactly W.T.
    if (not force_pallas) and M < min_pallas_rows:
        out = jnp.dot(
            h.reshape(M, K), w_packed[:K, :N],
            preferred_element_type=jnp.float32,
            precision=jax.lax.Precision.HIGHEST,
        ).astype(h.dtype) + b_packed[0, :N].astype(h.dtype)
        return out.reshape(*lead, N)

    x2d = h.reshape(M, K)
    rem = M % fold
    if rem:
        # Tiny pad (< fold rows) so the fold reshape stays a pure bitcast.
        x2d = jnp.pad(x2d, ((0, fold - rem), (0, 0)))
    M_padded = x2d.shape[0]
    Mf = M_padded // fold
    xf = x2d.reshape(Mf, Kp)  # `fold` input rows per lane-dense wide row

    # Tile selection: big tiles, but keep >= _MIN_GRID_STEPS steps so both TCs
    # get work on v7x.  The ragged last tile is masked by Pallas (OOB reads are
    # junk rows whose outputs are never written back).
    if Mf < 8:
        TM = Mf                       # block == full array dim (layout-legal)
    else:
        TM = min(tm, max(8, _round_up(pl.cdiv(Mf, _MIN_GRID_STEPS), 8)))
    grid = (pl.cdiv(Mf, TM),)

    itemsize = jnp.dtype(h.dtype).itemsize
    vmem_bytes = (2 * TM * (Kp + Np) * itemsize      # double-buffered x + out
                  + 2 * (Kp * Np + Np) * itemsize    # packed weight + bias
                  + (1 << 20))                       # compiler scratch margin
    vmem_limit = int(min(max(vmem_bytes, 16 * 1024 * 1024), 40 * 1024 * 1024))

    out_folded = pl.pallas_call(
        _linear_kernel,
        out_shape=jax.ShapeDtypeStruct((Mf, Np), h.dtype),
        grid_spec=pltpu.PrefetchScalarGridSpec(
            num_scalar_prefetch=0,
            grid=grid,
            in_specs=[
                pl.BlockSpec((TM, Kp), lambda i: (i, 0)),   # x tile (pipelined)
                pl.BlockSpec((Kp, Np), lambda i: (0, 0)),   # packed W (resident)
                pl.BlockSpec((1, Np), lambda i: (0, 0)),    # packed bias
            ],
            out_specs=pl.BlockSpec((TM, Np), lambda i: (i, 0)),
        ),
        compiler_params=pltpu.CompilerParams(
            dimension_semantics=("parallel",),
            vmem_limit_bytes=vmem_limit,
        ),
    )(xf, w_packed, b_packed)

    out = out_folded.reshape(M_padded, N)
    if rem:
        out = out[:M]
    return out.reshape(*lead, N)


if __name__ == "__main__":
    PROT_EMB = 32   # hp['prot_embedding_dim']
    GNN_HID = 32    # hp['gnn_hidden_dim']
    BATCH, SEQ = 2, 8

    key = jax.random.PRNGKey(0)
    k_h, k_w, k_b, k_h2 = jax.random.split(key, 4)

    h = jax.random.normal(k_h, (BATCH, SEQ, PROT_EMB), dtype=jnp.float32)
    # PyTorch Linear layout: weight (out_features, in_features), bias (out,)
    weight = jax.random.normal(k_w, (GNN_HID, PROT_EMB), dtype=jnp.float32) * 0.1
    bias = jax.random.normal(k_b, (GNN_HID,), dtype=jnp.float32) * 0.1

    # One-time parameter packing (hoisted out of the forward path).
    w_packed, b_packed = pack_linear_params(weight, bias)

    ref = h @ weight.T + bias

    # (1) Pallas kernel path at the module's nominal small shape (forced,
    #     since below the threshold it would take the plain-XLA fast path).
    out = prot_final_v3_forward(h, w_packed, b_packed, force_pallas=True)
    out = jax.block_until_ready(out)
    assert out.shape == (BATCH, SEQ, GNN_HID)
    assert jnp.allclose(out, ref, atol=1e-5, rtol=1e-5)

    # (2) Default dispatch at the nominal shape (small-M fast path).
    out_fast = jax.block_until_ready(prot_final_v3_forward(h, w_packed, b_packed))
    assert jnp.allclose(out_fast, ref, atol=1e-5, rtol=1e-5)

    # (3) Ragged M (2*515 = 1030 rows): exercises the fold padding, M tiling,
    #     and the masked out-of-bounds last tile.
    h2 = jax.random.normal(k_h2, (2, 515, PROT_EMB), dtype=jnp.float32)
    out2 = prot_final_v3_forward(h2, w_packed, b_packed, tm=128,
                                 force_pallas=True)
    out2 = jax.block_until_ready(out2)
    ref2 = h2 @ weight.T + bias
    assert out2.shape == (2, 515, GNN_HID)
    assert jnp.allclose(out2, ref2, atol=1e-5, rtol=1e-5)

    print("KERNEL_OK")
</pallas_src>

<mosaic_0001>
module attributes {stable_mosaic.version = 11 : i64} {
  func.func @_linear_kernel(%arg0: i32, %arg1: memref<4x128xf32, #tpu.memory_space<vmem>>, %arg2: memref<128x128xf32, #tpu.memory_space<vmem>>, %arg3: memref<1x128xf32, #tpu.memory_space<vmem>>, %arg4: memref<4x128xf32, #tpu.memory_space<vmem>>) attributes {dimension_semantics = [#tpu.dimension_semantics<parallel>], iteration_bounds = array<i64: 1>, scalar_prefetch = 0 : i64, scratch_operands = 0 : i64, tpu.core_type = #tpu.core_type<tc>, window_params = [{transform_indices = @transform_0, window_bounds = array<i64: 4, 128>}, {pipeline_mode = #tpu.pipeline_mode<synchronous>, transform_indices = @transform_1, window_bounds = array<i64: 128, 128>}, {pipeline_mode = #tpu.pipeline_mode<synchronous>, transform_indices = @transform_2, window_bounds = array<i64: 1, 128>}, {transform_indices = @transform_3, window_bounds = array<i64: 4, 128>}]} {
    %c0 = arith.constant 0 : index
    %c0_0 = arith.constant 0 : index
    %0 = vector.load %arg1[%c0, %c0_0] : memref<4x128xf32, #tpu.memory_space<vmem>>, vector<4x128xf32>
    %c0_1 = arith.constant 0 : index
    %c0_2 = arith.constant 0 : index
    %1 = vector.load %arg2[%c0_1, %c0_2] : memref<128x128xf32, #tpu.memory_space<vmem>>, vector<128x128xf32>
    %cst = arith.constant dense<0.000000e+00> : vector<4x128xf32>
    %2 = tpu.matmul %0, %1, %cst {dimension_numbers = #tpu.dot_dimension_numbers<[1], [0], [0], [1], [0, 0, 1, 1], [], []>, precision = #tpu.contract_precision<fp32>} : vector<4x128xf32>, vector<128x128xf32>, vector<4x128xf32> -> vector<4x128xf32>
    %c0_3 = arith.constant 0 : index
    %c0_4 = arith.constant 0 : index
    %3 = vector.load %arg3[%c0_3, %c0_4] : memref<1x128xf32, #tpu.memory_space<vmem>>, vector<1x128xf32>
    %4 = vector.broadcast %3 : vector<1x128xf32> to vector<4x128xf32>
    %5 = arith.addf %2, %4 : vector<4x128xf32>
    %c0_5 = arith.constant 0 : index
    %c0_6 = arith.constant 0 : index
    %6 = vector.load %arg4[%c0_5, %c0_6] : memref<4x128xf32, #tpu.memory_space<vmem>>, vector<4x128xf32>
    tpu.vector_store %arg4[%c0_5, %c0_6], %5 {strides = array<i32>} : memref<4x128xf32, #tpu.memory_space<vmem>>, vector<4x128xf32>,
    return
  }
  func.func @transform_0(%arg0: i32) -> (i32, i32) {
    %c0_i32 = arith.constant 0 : i32
    %c0_i32_0 = arith.constant 0 : i32
    return %arg0, %c0_i32 : i32, i32
  }
  func.func @transform_1(%arg0: i32) -> (i32, i32) {
    %c0_i32 = arith.constant 0 : i32
    %c0_i32_0 = arith.constant 0 : i32
    %c0_i32_1 = arith.constant 0 : i32
    return %c0_i32, %c0_i32_0 : i32, i32
  }
  func.func @transform_2(%arg0: i32) -> (i32, i32) {
    %c0_i32 = arith.constant 0 : i32
    %c0_i32_0 = arith.constant 0 : i32
    %c0_i32_1 = arith.constant 0 : i32
    return %c0_i32, %c0_i32_0 : i32, i32
  }
  func.func @transform_3(%arg0: i32) -> (i32, i32) {
    %c0_i32 = arith.constant 0 : i32
    %c0_i32_0 = arith.constant 0 : i32
    return %arg0, %c0_i32 : i32, i32
  }
}

</mosaic_0001>

<llo_original>
// kernel: prot_final_v3_forward.1
$region0: #{prot_final_v3_forward.1}
  #allocation0 [shape = 'u32[]', space=smem, size = 0x4, offset = 0x4, fixed_abs, tag = 'smem constant byte address 0x4 - core index']
  #allocation1 [shape = 'u32[144,128]{1,0:T(1,128)}', space=vmem, size = 0x12000, scoped, tag = 'internal scratch']
  %s0 = inlined_call_operand.vmem [shape: f32[4,128], index: 0, kind: input, shape index: {}]
  %s1 = inlined_call_operand.hbm [shape: f32[128,128], index: 1, kind: input, shape index: {}]
  %s2 = inlined_call_operand.vmem [shape: f32[1,128], index: 2, kind: input, shape index: {}]
  %s3 = inlined_call_operand.vmem [shape: f32[4,128], index: 3, kind: output, shape index: {}]
  %s4 = sld [smem:[#allocation0]]
  $region26: #{prot_final_v3_forward.1} parent=0
    _
  %s6 = ssub.s32 1, %s4
  %s7 = scalar_select 0, %s6, %s4
  $region1: #{prot_final_v3_forward.1} parent=0
    #allocation2 [shape = 'u8[65536]{0}', space=vmem, size = 0x10000, scoped, tag = 'input window, operand 1, single buffered']
    #allocation3 [shape = 's32[1]{0}', space=sflag, size = 0x4, scoped, tag = 'scoped memory for prot_final_v3_forward.1']
    %8 = vsyncpa [#allocation3], 0
    // Predicated region
    $region2: #{prot_final_v3_forward.1} parent=1 // pred_check
      _
    $region3: #{prot_final_v3_forward.1} parent=1 // pred_check_branch
      %10 = sbr.rel (0) target = $region5
    $region4: #{prot_final_v3_forward.1} parent=1 // pred_region
      _
    $region5: #{prot_final_v3_forward.1} parent=1 // pred_fallthru
      _
    // Predicated region
    $region6: #{prot_final_v3_forward.1} parent=1 // pred_check
      _
    $region7: #{prot_final_v3_forward.1} parent=1 // pred_check_branch
      %12 = sbr.rel (0) target = $region9
    $region8: #{prot_final_v3_forward.1} parent=1 // pred_region
      %s14 = ssub.s32 2048, 2048
      %15 = vsyncadd [#allocation3], %s14
      %s16 = sshll.u32 [#allocation2], 4
      %s17 = int_to_ptr.vmem [resolvable:$true] %s16
      %22 = dma.hbm_to_vmem [thread:$0]  %s1, 2048, %s17, [#allocation3], 128, 128, 8
    $region9: #{prot_final_v3_forward.1} parent=1 // pred_fallthru
      _
    // Predicated region
    $region10: #{prot_final_v3_forward.1} parent=1 // pred_check
      _
    $region11: #{prot_final_v3_forward.1} parent=1 // pred_check_branch
      %24 = sbr.rel (0) target = $region13
    $region12: #{prot_final_v3_forward.1} parent=1 // pred_region
      _
    $region13: #{prot_final_v3_forward.1} parent=1 // pred_fallthru
      _
    // Predicated region
    $region14: #{prot_final_v3_forward.1} parent=1 // pred_check
      _
    $region15: #{prot_final_v3_forward.1} parent=1 // pred_check_branch
      %26 = sbr.rel (0) target = $region17
    $region16: #{prot_final_v3_forward.1} parent=1 // pred_region
      %27 = dma.done [#allocation3], 2048
    $region17: #{prot_final_v3_forward.1} parent=1 // pred_fallthru
      _
    %v28 = vld [vmem:[%s0] sm:$0xf]
    %v29 = vld [vmem:[#allocation2] sm:$0xff]
    %v30 = vld [vmem:[#allocation2 + $0x8] sm:$0xff]
    %v31 = vld [vmem:[#allocation2 + $0x10] sm:$0xff]
    %v32 = vld [vmem:[#allocation2 + $0x18] sm:$0xff]
    %v33 = vld [vmem:[#allocation2 + $0x20] sm:$0xff]
    %v34 = vld [vmem:[#allocation2 + $0x28] sm:$0xff]
    %v35 = vld [vmem:[#allocation2 + $0x30] sm:$0xff]
    %v36 = vld [vmem:[#allocation2 + $0x38] sm:$0xff]
    %v37 = vld [vmem:[#allocation2 + $0x40] sm:$0xff]
    %v38 = vld [vmem:[#allocation2 + $0x48] sm:$0xff]
    %v39 = vld [vmem:[#allocation2 + $0x50] sm:$0xff]
    %v40 = vld [vmem:[#allocation2 + $0x58] sm:$0xff]
    %v41 = vld [vmem:[#allocation2 + $0x60] sm:$0xff]
    %v42 = vld [vmem:[#allocation2 + $0x68] sm:$0xff]
    %v43 = vld [vmem:[#allocation2 + $0x70] sm:$0xff]
    %v44 = vld [vmem:[#allocation2 + $0x78] sm:$0xff]
    %v45 = vld [vmem:[%s2] sm:$0x1]
    %v47 = vlaneseq
    %v48 = vshrl.u32 %v47, 7
    %v49 = vsub.s32 0, %v48
    %v50 = vrot.slane %v45, %v49
    %52 = vmatprep.subr.mxu0 0.0
    %v53 = vand.u32 %v44, 4294901760
    %54 = vmatpush1.msra.mxu0 %v53
    %55 = vmatprep.subr.mxu0 0.0
    %v56 = vand.u32 %v43, 4294901760
    %57 = vmatpush1.msra.mxu0 %v56
    %58 = vmatprep.subr.mxu0 0.0
    %v59 = vand.u32 %v42, 4294901760
    %60 = vmatpush1.msra.mxu0 %v59
    %61 = vmatprep.subr.mxu0 0.0
    %v62 = vand.u32 %v41, 4294901760
    %63 = vmatpush1.msra.mxu0 %v62
    %64 = vmatprep.subr.mxu0 0.0
    %v65 = vand.u32 %v40, 4294901760
    %66 = vmatpush1.msra.mxu0 %v65
    %67 = vmatprep.subr.mxu0 0.0
    %v68 = vand.u32 %v39, 4294901760
    %69 = vmatpush1.msra.mxu0 %v68
    %70 = vmatprep.subr.mxu0 0.0
    %v71 = vand.u32 %v38, 4294901760
    %72 = vmatpush1.msra.mxu0 %v71
    %73 = vmatprep.subr.mxu0 0.0
    %v74 = vand.u32 %v37, 4294901760
    %75 = vmatpush1.msra.mxu0 %v74
    %76 = vmatprep.subr.mxu0 0.0
    %v77 = vand.u32 %v36, 4294901760
    %78 = vmatpush1.msra.mxu0 %v77
    %79 = vmatprep.subr.mxu0 0.0
    %v80 = vand.u32 %v35, 4294901760
    %81 = vmatpush1.msra.mxu0 %v80
    %82 = vmatprep.subr.mxu0 0.0
    %v83 = vand.u32 %v34, 4294901760
    %84 = vmatpush1.msra.mxu0 %v83
    %85 = vmatprep.subr.mxu0 0.0
    %v86 = vand.u32 %v33, 4294901760
    %87 = vmatpush1.msra.mxu0 %v86
    %88 = vmatprep.subr.mxu0 0.0
    %v89 = vand.u32 %v32, 4294901760
    %90 = vmatpush1.msra.mxu0 %v89
    %91 = vmatprep.subr.mxu0 0.0
    %v92 = vand.u32 %v31, 4294901760
    %93 = vmatpush1.msra.mxu0 %v92
    %94 = vmatprep.subr.mxu0 0.0
    %v95 = vand.u32 %v30, 4294901760
    %96 = vmatpush1.msra.mxu0 %v95
    %97 = vmatprep.subr.mxu0 0.0
    %v98 = vand.u32 %v29, 4294901760
    %99 = vmatpush1.msra.mxu0 %v98
    %100 = vmatprep.subr.mxu0 0.0
    %101 = vmatpush2.msra.mxu0 0.0
    %102 = vmatprep.subr.mxu0 0.0
    %103 = vmatpush2.msra.mxu0 0.0
    %104 = vmatprep.subr.mxu0 0.0
    %105 = vmatpush2.msra.mxu0 0.0
    %106 = vmatprep.subr.mxu0 0.0
    %107 = vmatpush2.msra.mxu0 0.0
    %108 = vmatprep.subr.mxu0 0.0
    %109 = vmatpush2.msra.mxu0 0.0
    %110 = vmatprep.subr.mxu0 0.0
    %111 = vmatpush2.msra.mxu0 0.0
    %112 = vmatprep.subr.mxu0 0.0
    %113 = vmatpush2.msra.mxu0 0.0
    %114 = vmatprep.subr.mxu0 0.0
    %115 = vmatpush2.msra.mxu0 0.0
    %116 = vmatprep.subr.mxu0 0.0
    %117 = vmatpush2.msra.mxu0 0.0
    %118 = vmatprep.subr.mxu0 0.0
    %119 = vmatpush2.msra.mxu0 0.0
    %120 = vmatprep.subr.mxu0 0.0
    %121 = vmatpush2.msra.mxu0 0.0
    %122 = vmatprep.subr.mxu0 0.0
    %123 = vmatpush2.msra.mxu0 0.0
    %124 = vmatprep.subr.mxu0 0.0
    %125 = vmatpush2.msra.mxu0 0.0
    %126 = vmatprep.subr.mxu0 0.0
    %127 = vmatpush2.msra.mxu0 0.0
    %128 = vmatprep.subr.mxu0 0.0
    %129 = vmatpush2.msra.mxu0 0.0
    %130 = vmatprep.subr.mxu0 0.0
    %131 = vmatpush2.msra.mxu0 0.0
    %132 = vmatprep.mubr.f32.mxu0 0.0
    %v133 = vand.u32 %v28, 4294901760
    %v134 = vsub.f32 %v28, %v133
    %v135 = vand.u32 %v134, 4294901760
    %v136 = vsub.f32 %v134, %v135
    %v137 = vand.u32 %v136, 4294901760
    %138 = vmatmul.mubr.f32.gmra.mxu0 %v137
    %v139 = vpop.f32.mrf.mxu0
    %v140 = vadd.f32 %v50, %v139
    %v141 = vpop.f32.mrf.mxu0
    %142 = vdwg.mxu0
    %143 = vmatprep.subr.mxu0 0.0
    %v144 = vand.u32 %v44, 4294901760
    %v145 = vsub.f32 %v44, %v144
    %v146 = vand.u32 %v145, 4294901760
    %v147 = vsub.f32 %v145, %v146
    %v148 = vand.u32 %v147, 4294901760
    %149 = vmatpush1.msra.mxu0 %v148
    %150 = vmatprep.subr.mxu0 0.0
    %v151 = vand.u32 %v43, 4294901760
    %v152 = vsub.f32 %v43, %v151
    %v153 = vand.u32 %v152, 4294901760
    %v154 = vsub.f32 %v152, %v153
    %v155 = vand.u32 %v154, 4294901760
    %156 = vmatpush1.msra.mxu0 %v155
    %157 = vmatprep.subr.mxu0 0.0
    %v158 = vand.u32 %v42, 4294901760
    %v159 = vsub.f32 %v42, %v158
    %v160 = vand.u32 %v159, 4294901760
    %v161 = vsub.f32 %v159, %v160
    %v162 = vand.u32 %v161, 4294901760
    %163 = vmatpush1.msra.mxu0 %v162
    %164 = vmatprep.subr.mxu0 0.0
    %v165 = vand.u32 %v41, 4294901760
    %v166 = vsub.f32 %v41, %v165
    %v167 = vand.u32 %v166, 4294901760
    %v168 = vsub.f32 %v166, %v167
    %v169 = vand.u32 %v168, 4294901760
    %170 = vmatpush1.msra.mxu0 %v169
    %171 = vmatprep.subr.mxu0 0.0
    %v172 = vand.u32 %v40, 4294901760
    %v173 = vsub.f32 %v40, %v172
    %v174 = vand.u32 %v173, 4294901760
    %v175 = vsub.f32 %v173, %v174
    %v176 = vand.u32 %v175, 4294901760
    %177 = vmatpush1.msra.mxu0 %v176
    %178 = vmatprep.subr.mxu0 0.0
    %v179 = vand.u32 %v39, 4294901760
    %v180 = vsub.f32 %v39, %v179
    %v181 = vand.u32 %v180, 4294901760
    %v182 = vsub.f32 %v180, %v181
    %v183 = vand.u32 %v182, 4294901760
    %184 = vmatpush1.msra.mxu0 %v183
    %185 = vmatprep.subr.mxu0 0.0
    %v186 = vand.u32 %v38, 4294901760
    %v187 = vsub.f32 %v38, %v186
    %v188 = vand.u32 %v187, 4294901760
    %v189 = vsub.f32 %v187, %v188
    %v190 = vand.u32 %v189, 4294901760
    %191 = vmatpush1.msra.mxu0 %v190
    %192 = vmatprep.subr.mxu0 0.0
    %v193 = vand.u32 %v37, 4294901760
    %v194 = vsub.f32 %v37, %v193
    %v195 = vand.u32 %v194, 4294901760
    %v196 = vsub.f32 %v194, %v195
    %v197 = vand.u32 %v196, 4294901760
    %198 = vmatpush1.msra.mxu0 %v197
    %199 = vmatprep.subr.mxu0 0.0
    %v200 = vand.u32 %v36, 4294901760
    %v201 = vsub.f32 %v36, %v200
    %v202 = vand.u32 %v201, 4294901760
    %v203 = vsub.f32 %v201, %v202
    %v204 = vand.u32 %v203, 4294901760
    %205 = vmatpush1.msra.mxu0 %v204
    %206 = vmatprep.subr.mxu0 0.0
    %v207 = vand.u32 %v35, 4294901760
    %v208 = vsub.f32 %v35, %v207
    %v209 = vand.u32 %v208, 4294901760
    %v210 = vsub.f32 %v208, %v209
    %v211 = vand.u32 %v210, 4294901760
    %212 = vmatpush1.msra.mxu0 %v211
    %213 = vmatprep.subr.mxu0 0.0
    %v214 = vand.u32 %v34, 4294901760
    %v215 = vsub.f32 %v34, %v214
    %v216 = vand.u32 %v215, 4294901760
    %v217 = vsub.f32 %v215, %v216
    %v218 = vand.u32 %v217, 4294901760
    %219 = vmatpush1.msra.mxu0 %v218
    %220 = vmatprep.subr.mxu0 0.0
    %v221 = vand.u32 %v33, 4294901760
    %v222 = vsub.f32 %v33, %v221
    %v223 = vand.u32 %v222, 4294901760
    %v224 = vsub.f32 %v222, %v223
    %v225 = vand.u32 %v224, 4294901760
    %226 = vmatpush1.msra.mxu0 %v225
    %227 = vmatprep.subr.mxu0 0.0
    %v228 = vand.u32 %v32, 4294901760
    %v229 = vsub.f32 %v32, %v228
    %v230 = vand.u32 %v229, 4294901760
    %v231 = vsub.f32 %v229, %v230
    %v232 = vand.u32 %v231, 4294901760
    %233 = vmatpush1.msra.mxu0 %v232
    %234 = vmatprep.subr.mxu0 0.0
    %v235 = vand.u32 %v31, 4294901760
    %v236 = vsub.f32 %v31, %v235
    %v237 = vand.u32 %v236, 4294901760
    %v238 = vsub.f32 %v236, %v237
    %v239 = vand.u32 %v238, 4294901760
    %240 = vmatpush1.msra.mxu0 %v239
    %241 = vmatprep.subr.mxu0 0.0
    %v242 = vand.u32 %v30, 4294901760
    %v243 = vsub.f32 %v30, %v242
    %v244 = vand.u32 %v243, 4294901760
    %v245 = vsub.f32 %v243, %v244
    %v246 = vand.u32 %v245, 4294901760
    %247 = vmatpush1.msra.mxu0 %v246
    %248 = vmatprep.subr.mxu0 0.0
    %v249 = vand.u32 %v29, 4294901760
    %v250 = vsub.f32 %v29, %v249
    %v251 = vand.u32 %v250, 4294901760
    %v252 = vsub.f32 %v250, %v251
    %v253 = vand.u32 %v252, 4294901760
    %254 = vmatpush1.msra.mxu0 %v253
    %255 = vmatprep.subr.mxu0 0.0
    %256 = vmatpush2.msra.mxu0 0.0
    %257 = vmatprep.subr.mxu0 0.0
    %258 = vmatpush2.msra.mxu0 0.0
    %259 = vmatprep.subr.mxu0 0.0
    %260 = vmatpush2.msra.mxu0 0.0
    %261 = vmatprep.subr.mxu0 0.0
    %262 = vmatpush2.msra.mxu0 0.0
    %263 = vmatprep.subr.mxu0 0.0
    %264 = vmatpush2.msra.mxu0 0.0
    %265 = vmatprep.subr.mxu0 0.0
    %266 = vmatpush2.msra.mxu0 0.0
    %267 = vmatprep.subr.mxu0 0.0
    %268 = vmatpush2.msra.mxu0 0.0
    %269 = vmatprep.subr.mxu0 0.0
    %270 = vmatpush2.msra.mxu0 0.0
    %271 = vmatprep.subr.mxu0 0.0
    %272 = vmatpush2.msra.mxu0 0.0
    %273 = vmatprep.subr.mxu0 0.0
    %274 = vmatpush2.msra.mxu0 0.0
    %275 = vmatprep.subr.mxu0 0.0
    %276 = vmatpush2.msra.mxu0 0.0
    %277 = vmatprep.subr.mxu0 0.0
    %278 = vmatpush2.msra.mxu0 0.0
    %279 = vmatprep.subr.mxu0 0.0
    %280 = vmatpush2.msra.mxu0 0.0
    %281 = vmatprep.subr.mxu0 0.0
    %282 = vmatpush2.msra.mxu0 0.0
    %283 = vmatprep.subr.mxu0 0.0
    %284 = vmatpush2.msra.mxu0 0.0
    %285 = vmatprep.subr.mxu0 0.0
    %286 = vmatpush2.msra.mxu0 0.0
    %287 = vmatprep.mubr.f32.mxu0 0.0
    %v288 = vand.u32 %v28, 4294901760
    %289 = vmatmul.mubr.f32.gmra.mxu0 %v288
    %v290 = vpop.f32.mrf.mxu0
    %v291 = vadd.f32 %v140, %v290
    %v292 = vpop.f32.mrf.mxu0
    %293 = vdwg.mxu0
    %294 = vmatprep.subr.mxu0 0.0
    %v295 = vand.u32 %v44, 4294901760
    %v296 = vsub.f32 %v44, %v295
    %297 = vmatpush1.msra.mxu0 %v296
    %298 = vmatprep.subr.mxu0 0.0
    %v299 = vand.u32 %v43, 4294901760
    %v300 = vsub.f32 %v43, %v299
    %301 = vmatpush1.msra.mxu0 %v300
    %302 = vmatprep.subr.mxu0 0.0
    %v303 = vand.u32 %v42, 4294901760
    %v304 = vsub.f32 %v42, %v303
    %305 = vmatpush1.msra.mxu0 %v304
    %306 = vmatprep.subr.mxu0 0.0
    %v307 = vand.u32 %v41, 4294901760
    %v308 = vsub.f32 %v41, %v307
    %309 = vmatpush1.msra.mxu0 %v308
    %310 = vmatprep.subr.mxu0 0.0
    %v311 = vand.u32 %v40, 4294901760
    %v312 = vsub.f32 %v40, %v311
    %313 = vmatpush1.msra.mxu0 %v312
    %314 = vmatprep.subr.mxu0 0.0
    %v315 = vand.u32 %v39, 4294901760
    %v316 = vsub.f32 %v39, %v315
    %317 = vmatpush1.msra.mxu0 %v316
    %318 = vmatprep.subr.mxu0 0.0
    %v319 = vand.u32 %v38, 4294901760
    %v320 = vsub.f32 %v38, %v319
    %321 = vmatpush1.msra.mxu0 %v320
    %322 = vmatprep.subr.mxu0 0.0
    %v323 = vand.u32 %v37, 4294901760
    %v324 = vsub.f32 %v37, %v323
    %325 = vmatpush1.msra.mxu0 %v324
    %326 = vmatprep.subr.mxu0 0.0
    %v327 = vand.u32 %v36, 4294901760
    %v328 = vsub.f32 %v36, %v327
    %329 = vmatpush1.msra.mxu0 %v328
    %330 = vmatprep.subr.mxu0 0.0
    %v331 = vand.u32 %v35, 4294901760
    %v332 = vsub.f32 %v35, %v331
    %333 = vmatpush1.msra.mxu0 %v332
    %334 = vmatprep.subr.mxu0 0.0
    %v335 = vand.u32 %v34, 4294901760
    %v336 = vsub.f32 %v34, %v335
    %337 = vmatpush1.msra.mxu0 %v336
    %338 = vmatprep.subr.mxu0 0.0
    %v339 = vand.u32 %v33, 4294901760
    %v340 = vsub.f32 %v33, %v339
    %341 = vmatpush1.msra.mxu0 %v340
    %342 = vmatprep.subr.mxu0 0.0
    %v343 = vand.u32 %v32, 4294901760
    %v344 = vsub.f32 %v32, %v343
    %345 = vmatpush1.msra.mxu0 %v344
    %346 = vmatprep.subr.mxu0 0.0
    %v347 = vand.u32 %v31, 4294901760
    %v348 = vsub.f32 %v31, %v347
    %349 = vmatpush1.msra.mxu0 %v348
    %350 = vmatprep.subr.mxu0 0.0
    %v351 = vand.u32 %v30, 4294901760
    %v352 = vsub.f32 %v30, %v351
    %353 = vmatpush1.msra.mxu0 %v352
    %354 = vmatprep.subr.mxu0 0.0
    %v355 = vand.u32 %v29, 4294901760
    %v356 = vsub.f32 %v29, %v355
    %357 = vmatpush1.msra.mxu0 %v356
    %358 = vmatprep.subr.mxu0 0.0
    %359 = vmatpush2.msra.mxu0 0.0
    %360 = vmatprep.subr.mxu0 0.0
    %361 = vmatpush2.msra.mxu0 0.0
    %362 = vmatprep.subr.mxu0 0.0
    %363 = vmatpush2.msra.mxu0 0.0
    %364 = vmatprep.subr.mxu0 0.0
    %365 = vmatpush2.msra.mxu0 0.0
    %366 = vmatprep.subr.mxu0 0.0
    %367 = vmatpush2.msra.mxu0 0.0
    %368 = vmatprep.subr.mxu0 0.0
    %369 = vmatpush2.msra.mxu0 0.0
    %370 = vmatprep.subr.mxu0 0.0
    %371 = vmatpush2.msra.mxu0 0.0
    %372 = vmatprep.subr.mxu0 0.0
    %373 = vmatpush2.msra.mxu0 0.0
    %374 = vmatprep.subr.mxu0 0.0
    %375 = vmatpush2.msra.mxu0 0.0
    %376 = vmatprep.subr.mxu0 0.0
    %377 = vmatpush2.msra.mxu0 0.0
    %378 = vmatprep.subr.mxu0 0.0
    %379 = vmatpush2.msra.mxu0 0.0
    %380 = vmatprep.subr.mxu0 0.0
    %381 = vmatpush2.msra.mxu0 0.0
    %382 = vmatprep.subr.mxu0 0.0
    %383 = vmatpush2.msra.mxu0 0.0
    %384 = vmatprep.subr.mxu0 0.0
    %385 = vmatpush2.msra.mxu0 0.0
    %386 = vmatprep.subr.mxu0 0.0
    %387 = vmatpush2.msra.mxu0 0.0
    %388 = vmatprep.subr.mxu0 0.0
    %389 = vmatpush2.msra.mxu0 0.0
    %390 = vmatprep.mubr.f32.mxu0 0.0
    %v391 = vand.u32 %v28, 4294901760
    %v392 = vsub.f32 %v28, %v391
    %393 = vmatmul.mubr.f32.gmra.mxu0 %v392
    %v394 = vpop.f32.mrf.mxu0
    %v395 = vadd.f32 %v291, %v394
    %v396 = vpop.f32.mrf.mxu0
    %397 = vdwg.mxu0
    %398 = vmatprep.subr.mxu0 0.0
    %v399 = vand.u32 %v44, 4294901760
    %400 = vmatpush1.msra.mxu0 %v399
    %401 = vmatprep.subr.mxu0 0.0
    %v402 = vand.u32 %v43, 4294901760
    %403 = vmatpush1.msra.mxu0 %v402
    %404 = vmatprep.subr.mxu0 0.0
    %v405 = vand.u32 %v42, 4294901760
    %406 = vmatpush1.msra.mxu0 %v405
    %407 = vmatprep.subr.mxu0 0.0
    %v408 = vand.u32 %v41, 4294901760
    %409 = vmatpush1.msra.mxu0 %v408
    %410 = vmatprep.subr.mxu0 0.0
    %v411 = vand.u32 %v40, 4294901760
    %412 = vmatpush1.msra.mxu0 %v411
    %413 = vmatprep.subr.mxu0 0.0
    %v414 = vand.u32 %v39, 4294901760
    %415 = vmatpush1.msra.mxu0 %v414
    %416 = vmatprep.subr.mxu0 0.0
    %v417 = vand.u32 %v38, 4294901760
    %418 = vmatpush1.msra.mxu0 %v417
    %419 = vmatprep.subr.mxu0 0.0
    %v420 = vand.u32 %v37, 4294901760
    %421 = vmatpush1.msra.mxu0 %v420
    %422 = vmatprep.subr.mxu0 0.0
    %v423 = vand.u32 %v36, 4294901760
    %424 = vmatpush1.msra.mxu0 %v423
    %425 = vmatprep.subr.mxu0 0.0
    %v426 = vand.u32 %v35, 4294901760
    %427 = vmatpush1.msra.mxu0 %v426
    %428 = vmatprep.subr.mxu0 0.0
    %v429 = vand.u32 %v34, 4294901760
    %430 = vmatpush1.msra.mxu0 %v429
    %431 = vmatprep.subr.mxu0 0.0
    %v432 = vand.u32 %v33, 4294901760
    %433 = vmatpush1.msra.mxu0 %v432
    %434 = vmatprep.subr.mxu0 0.0
    %v435 = vand.u32 %v32, 4294901760
    %436 = vmatpush1.msra.mxu0 %v435
    %437 = vmatprep.subr.mxu0 0.0
    %v438 = vand.u32 %v31, 4294901760
    %439 = vmatpush1.msra.mxu0 %v438
    %440 = vmatprep.subr.mxu0 0.0
    %v441 = vand.u32 %v30, 4294901760
    %442 = vmatpush1.msra.mxu0 %v441
    %443 = vmatprep.subr.mxu0 0.0
    %v444 = vand.u32 %v29, 4294901760
    %445 = vmatpush1.msra.mxu0 %v444
    %446 = vmatprep.subr.mxu0 0.0
    %447 = vmatpush2.msra.mxu0 0.0
    %448 = vmatprep.subr.mxu0 0.0
    %449 = vmatpush2.msra.mxu0 0.0
    %450 = vmatprep.subr.mxu0 0.0
    %451 = vmatpush2.msra.mxu0 0.0
    %452 = vmatprep.subr.mxu0 0.0
    %453 = vmatpush2.msra.mxu0 0.0
    %454 = vmatprep.subr.mxu0 0.0
    %455 = vmatpush2.msra.mxu0 0.0
    %456 = vmatprep.subr.mxu0 0.0
    %457 = vmatpush2.msra.mxu0 0.0
    %458 = vmatprep.subr.mxu0 0.0
    %459 = vmatpush2.msra.mxu0 0.0
    %460 = vmatprep.subr.mxu0 0.0
    %461 = vmatpush2.msra.mxu0 0.0
    %462 = vmatprep.subr.mxu0 0.0
    %463 = vmatpush2.msra.mxu0 0.0
    %464 = vmatprep.subr.mxu0 0.0
    %465 = vmatpush2.msra.mxu0 0.0
    %466 = vmatprep.subr.mxu0 0.0
    %467 = vmatpush2.msra.mxu0 0.0
    %468 = vmatprep.subr.mxu0 0.0
    %469 = vmatpush2.msra.mxu0 0.0
    %470 = vmatprep.subr.mxu0 0.0
    %471 = vmatpush2.msra.mxu0 0.0
    %472 = vmatprep.subr.mxu0 0.0
    %473 = vmatpush2.msra.mxu0 0.0
    %474 = vmatprep.subr.mxu0 0.0
    %475 = vmatpush2.msra.mxu0 0.0
    %476 = vmatprep.subr.mxu0 0.0
    %477 = vmatpush2.msra.mxu0 0.0
    %478 = vmatprep.mubr.f32.mxu0 0.0
    %v479 = vand.u32 %v28, 4294901760
    %v480 = vsub.f32 %v28, %v479
    %v481 = vand.u32 %v480, 4294901760
    %482 = vmatmul.mubr.f32.gmra.mxu0 %v481
    %v483 = vpop.f32.mrf.mxu0
    %v484 = vadd.f32 %v395, %v483
    %v485 = vpop.f32.mrf.mxu0
    %486 = vdwg.mxu0
    %487 = vmatprep.subr.mxu0 0.0
    %v488 = vand.u32 %v44, 4294901760
    %v489 = vsub.f32 %v44, %v488
    %v490 = vand.u32 %v489, 4294901760
    %491 = vmatpush1.msra.mxu0 %v490
    %492 = vmatprep.subr.mxu0 0.0
    %v493 = vand.u32 %v43, 4294901760
    %v494 = vsub.f32 %v43, %v493
    %v495 = vand.u32 %v494, 4294901760
    %496 = vmatpush1.msra.mxu0 %v495
    %497 = vmatprep.subr.mxu0 0.0
    %v498 = vand.u32 %v42, 4294901760
    %v499 = vsub.f32 %v42, %v498
    %v500 = vand.u32 %v499, 4294901760
    %501 = vmatpush1.msra.mxu0 %v500
    %502 = vmatprep.subr.mxu0 0.0
    %v503 = vand.u32 %v41, 4294901760
    %v504 = vsub.f32 %v41, %v503
    %v505 = vand.u32 %v504, 4294901760
    %506 = vmatpush1.msra.mxu0 %v505
    %507 = vmatprep.subr.mxu0 0.0
    %v508 = vand.u32 %v40, 4294901760
    %v509 = vsub.f32 %v40, %v508
    %v510 = vand.u32 %v509, 4294901760
    %511 = vmatpush1.msra.mxu0 %v510
    %512 = vmatprep.subr.mxu0 0.0
    %v513 = vand.u32 %v39, 4294901760
    %v514 = vsub.f32 %v39, %v513
    %v515 = vand.u32 %v514, 4294901760
    %516 = vmatpush1.msra.mxu0 %v515
    %517 = vmatprep.subr.mxu0 0.0
    %v518 = vand.u32 %v38, 4294901760
    %v519 = vsub.f32 %v38, %v518
    %v520 = vand.u32 %v519, 4294901760
    %521 = vmatpush1.msra.mxu0 %v520
    %522 = vmatprep.subr.mxu0 0.0
    %v523 = vand.u32 %v37, 4294901760
    %v524 = vsub.f32 %v37, %v523
    %v525 = vand.u32 %v524, 4294901760
    %526 = vmatpush1.msra.mxu0 %v525
    %527 = vmatprep.subr.mxu0 0.0
    %v528 = vand.u32 %v36, 4294901760
    %v529 = vsub.f32 %v36, %v528
    %v530 = vand.u32 %v529, 4294901760
    %531 = vmatpush1.msra.mxu0 %v530
    %532 = vmatprep.subr.mxu0 0.0
    %v533 = vand.u32 %v35, 4294901760
    %v534 = vsub.f32 %v35, %v533
    %v535 = vand.u32 %v534, 4294901760
    %536 = vmatpush1.msra.mxu0 %v535
    %537 = vmatprep.subr.mxu0 0.0
    %v538 = vand.u32 %v34, 4294901760
    %v539 = vsub.f32 %v34, %v538
    %v540 = vand.u32 %v539, 4294901760
    %541 = vmatpush1.msra.mxu0 %v540
    %542 = vmatprep.subr.mxu0 0.0
    %v543 = vand.u32 %v33, 4294901760
    %v544 = vsub.f32 %v33, %v543
    %v545 = vand.u32 %v544, 4294901760
    %546 = vmatpush1.msra.mxu0 %v545
    %547 = vmatprep.subr.mxu0 0.0
    %v548 = vand.u32 %v32, 4294901760
    %v549 = vsub.f32 %v32, %v548
    %v550 = vand.u32 %v549, 4294901760
    %551 = vmatpush1.msra.mxu0 %v550
    %552 = vmatprep.subr.mxu0 0.0
    %v553 = vand.u32 %v31, 4294901760
    %v554 = vsub.f32 %v31, %v553
    %v555 = vand.u32 %v554, 4294901760
    %556 = vmatpush1.msra.mxu0 %v555
    %557 = vmatprep.subr.mxu0 0.0
    %v558 = vand.u32 %v30, 4294901760
    %v559 = vsub.f32 %v30, %v558
    %v560 = vand.u32 %v559, 4294901760
    %561 = vmatpush1.msra.mxu0 %v560
    %562 = vmatprep.subr.mxu0 0.0
    %v563 = vand.u32 %v29, 4294901760
    %v564 = vsub.f32 %v29, %v563
    %v565 = vand.u32 %v564, 4294901760
    %566 = vmatpush1.msra.mxu0 %v565
    %567 = vmatprep.subr.mxu0 0.0
    %568 = vmatpush2.msra.mxu0 0.0
    %569 = vmatprep.subr.mxu0 0.0
    %570 = vmatpush2.msra.mxu0 0.0
    %571 = vmatprep.subr.mxu0 0.0
    %572 = vmatpush2.msra.mxu0 0.0
    %573 = vmatprep.subr.mxu0 0.0
    %574 = vmatpush2.msra.mxu0 0.0
    %575 = vmatprep.subr.mxu0 0.0
    %576 = vmatpush2.msra.mxu0 0.0
    %577 = vmatprep.subr.mxu0 0.0
    %578 = vmatpush2.msra.mxu0 0.0
    %579 = vmatprep.subr.mxu0 0.0
    %580 = vmatpush2.msra.mxu0 0.0
    %581 = vmatprep.subr.mxu0 0.0
    %582 = vmatpush2.msra.mxu0 0.0
    %583 = vmatprep.subr.mxu0 0.0
    %584 = vmatpush2.msra.mxu0 0.0
    %585 = vmatprep.subr.mxu0 0.0
    %586 = vmatpush2.msra.mxu0 0.0
    %587 = vmatprep.subr.mxu0 0.0
    %588 = vmatpush2.msra.mxu0 0.0
    %589 = vmatprep.subr.mxu0 0.0
    %590 = vmatpush2.msra.mxu0 0.0
    %591 = vmatprep.subr.mxu0 0.0
    %592 = vmatpush2.msra.mxu0 0.0
    %593 = vmatprep.subr.mxu0 0.0
    %594 = vmatpush2.msra.mxu0 0.0
    %595 = vmatprep.subr.mxu0 0.0
    %596 = vmatpush2.msra.mxu0 0.0
    %597 = vmatprep.subr.mxu0 0.0
    %598 = vmatpush2.msra.mxu0 0.0
    %599 = vmatprep.mubr.f32.mxu0 0.0
    %v600 = vand.u32 %v28, 4294901760
    %601 = vmatmul.mubr.f32.gmra.mxu0 %v600
    %v602 = vpop.f32.mrf.mxu0
    %v603 = vadd.f32 %v484, %v602
    %v604 = vpop.f32.mrf.mxu0
    %605 = vdwg.mxu0
    %606 = vmatprep.subr.mxu0 0.0
    %v607 = vand.u32 %v44, 4294901760
    %608 = vmatpush1.msra.mxu0 %v607
    %609 = vmatprep.subr.mxu0 0.0
    %v610 = vand.u32 %v43, 4294901760
    %611 = vmatpush1.msra.mxu0 %v610
    %612 = vmatprep.subr.mxu0 0.0
    %v613 = vand.u32 %v42, 4294901760
    %614 = vmatpush1.msra.mxu0 %v613
    %615 = vmatprep.subr.mxu0 0.0
    %v616 = vand.u32 %v41, 4294901760
    %617 = vmatpush1.msra.mxu0 %v616
    %618 = vmatprep.subr.mxu0 0.0
    %v619 = vand.u32 %v40, 4294901760
    %620 = vmatpush1.msra.mxu0 %v619
    %621 = vmatprep.subr.mxu0 0.0
    %v622 = vand.u32 %v39, 4294901760
    %623 = vmatpush1.msra.mxu0 %v622
    %624 = vmatprep.subr.mxu0 0.0
    %v625 = vand.u32 %v38, 4294901760
    %626 = vmatpush1.msra.mxu0 %v625
    %627 = vmatprep.subr.mxu0 0.0
    %v628 = vand.u32 %v37, 4294901760
    %629 = vmatpush1.msra.mxu0 %v628
    %630 = vmatprep.subr.mxu0 0.0
    %v631 = vand.u32 %v36, 4294901760
    %632 = vmatpush1.msra.mxu0 %v631
    %633 = vmatprep.subr.mxu0 0.0
    %v634 = vand.u32 %v35, 4294901760
    %635 = vmatpush1.msra.mxu0 %v634
    %636 = vmatprep.subr.mxu0 0.0
    %v637 = vand.u32 %v34, 4294901760
    %638 = vmatpush1.msra.mxu0 %v637
    %639 = vmatprep.subr.mxu0 0.0
    %v640 = vand.u32 %v33, 4294901760
    %641 = vmatpush1.msra.mxu0 %v640
    %642 = vmatprep.subr.mxu0 0.0
    %v643 = vand.u32 %v32, 4294901760
    %644 = vmatpush1.msra.mxu0 %v643
    %645 = vmatprep.subr.mxu0 0.0
    %v646 = vand.u32 %v31, 4294901760
    %647 = vmatpush1.msra.mxu0 %v646
    %648 = vmatprep.subr.mxu0 0.0
    %v649 = vand.u32 %v30, 4294901760
    %650 = vmatpush1.msra.mxu0 %v649
    %651 = vmatprep.subr.mxu0 0.0
    %v652 = vand.u32 %v29, 4294901760
    %653 = vmatpush1.msra.mxu0 %v652
    %654 = vmatprep.subr.mxu0 0.0
    %655 = vmatpush2.msra.mxu0 0.0
    %656 = vmatprep.subr.mxu0 0.0
    %657 = vmatpush2.msra.mxu0 0.0
    %658 = vmatprep.subr.mxu0 0.0
    %659 = vmatpush2.msra.mxu0 0.0
    %660 = vmatprep.subr.mxu0 0.0
    %661 = vmatpush2.msra.mxu0 0.0
    %662 = vmatprep.subr.mxu0 0.0
    %663 = vmatpush2.msra.mxu0 0.0
    %664 = vmatprep.subr.mxu0 0.0
    %665 = vmatpush2.msra.mxu0 0.0
    %666 = vmatprep.subr.mxu0 0.0
    %667 = vmatpush2.msra.mxu0 0.0
    %668 = vmatprep.subr.mxu0 0.0
    %669 = vmatpush2.msra.mxu0 0.0
    %670 = vmatprep.subr.mxu0 0.0
    %671 = vmatpush2.msra.mxu0 0.0
    %672 = vmatprep.subr.mxu0 0.0
    %673 = vmatpush2.msra.mxu0 0.0
    %674 = vmatprep.subr.mxu0 0.0
    %675 = vmatpush2.msra.mxu0 0.0
    %676 = vmatprep.subr.mxu0 0.0
    %677 = vmatpush2.msra.mxu0 0.0
    %678 = vmatprep.subr.mxu0 0.0
    %679 = vmatpush2.msra.mxu0 0.0
    %680 = vmatprep.subr.mxu0 0.0
    %681 = vmatpush2.msra.mxu0 0.0
    %682 = vmatprep.subr.mxu0 0.0
    %683 = vmatpush2.msra.mxu0 0.0
    %684 = vmatprep.subr.mxu0 0.0
    %685 = vmatpush2.msra.mxu0 0.0
    %686 = vmatprep.mubr.f32.mxu0 0.0
    %v687 = vand.u32 %v28, 4294901760
    %688 = vmatmul.mubr.f32.gmra.mxu0 %v687
    %v689 = vpop.f32.mrf.mxu0
    %v690 = vadd.f32 %v603, %v689
    %v691 = vpop.f32.mrf.mxu0
    %692 = vdwg.mxu0
    %693 = vst [vmem:[%s3] sm:$0xf] %v690
    // Predicated region
    $region18: #{prot_final_v3_forward.1} parent=1 // pred_check
      _
    $region19: #{prot_final_v3_forward.1} parent=1 // pred_check_branch
      %695 = sbr.rel (0) target = $region21
    $region20: #{prot_final_v3_forward.1} parent=1 // pred_region
      _
    $region21: #{prot_final_v3_forward.1} parent=1 // pred_fallthru
      _
    // Predicated region
    $region22: #{prot_final_v3_forward.1} parent=1 // pred_check
      _
    $region23: #{prot_final_v3_forward.1} parent=1 // pred_check_branch
      %697 = sbr.rel (0) target = $region25
    $region24: #{prot_final_v3_forward.1} parent=1 // pred_region
      _
    $region25: #{prot_final_v3_forward.1} parent=1 // pred_fallthru
      _
    %698 = vsyncpa [#allocation3], 1

</llo_original>
